<compile_context>
chip_gen: v5e
topology: v5e:2x2
jax: 0.10.0
libtpu: 0.0.40
codegen_flags: <defaults>
</compile_context>

<pallas_src>
import functools

import jax
import jax.numpy as jnp
from jax.experimental import pallas as pl
from jax.experimental.pallas import tpu as pltpu

_PHASE = 8  # output timesteps folded into one GEMM row (matches f32 sublane count)


def _round_up(x, m):
    return (x + m - 1) // m * m


def _n_pieces(kernel_size):
    # window position j = t_lo + k must cover [0, (PHASE-1) + (K-1)]
    return -(-(kernel_size + _PHASE - 1) // _PHASE)


# ----------------------------------------------------------------------------
# Weight folding (done ONCE at parameter setup, never per call)
# ----------------------------------------------------------------------------
def fold_location_weights(w_conv, w_dense):
    """Fold Conv1d + Linear weights into the phase-expanded GEMM operand.

    w_conv : (F, C, K)  torch Conv1d weight (out, in, k)
    w_dense: (D, F)     torch Linear weight (out, in)
    Returns W2 of shape (PHASE*C*P, PHASE*D) with
        W2[C*j + c, t_lo*D + d] = sum_f w_dense[d, f] * w_conv[f, c, j - t_lo]
    and zero where (j - t_lo) is outside [0, K).
    """
    f, c, k = w_conv.shape
    d = w_dense.shape[0]
    p = _n_pieces(k)
    wf = jnp.einsum("fck,df->kcd", w_conv, w_dense)              # (K, C, D)
    w2 = jnp.zeros((_PHASE * p, c, _PHASE, d), wf.dtype)
    for t_lo in range(_PHASE):
        w2 = w2.at[t_lo:t_lo + k, :, t_lo, :].set(wf)            # j = t_lo + k
    return w2.reshape(_PHASE * p * c, _PHASE * d)                # (8*C*P, 8*D)


# ----------------------------------------------------------------------------
# Fused Pallas kernel: in-VMEM im2col + single folded GEMM
# ----------------------------------------------------------------------------
def _location_layer_kernel(x_ref, w_ref, o_ref):
    # x_ref: (1, R, 8*C)    whole padded raw input for batch b (resident across T tiles)
    # w_ref: (8*C*P, 8*D)   folded + phase-expanded weights (resident)
    # o_ref: (1, tile8, 8*D)
    tile8 = o_ref.shape[1]
    lane_c = x_ref.shape[-1]                    # 8*C
    n_piece = w_ref.shape[0] // lane_c          # P

    u0 = pl.program_id(1) * tile8
    if tile8 % 8 == 0:                          # multi-tile path: sublane-aligned start
        u0 = pl.multiple_of(u0, 8)

    # One haloed window load, then P static sublane-shifted slices concatenated
    # along lanes build the im2col slab entirely on-chip (no HBM expansion).
    x_win = x_ref[0, pl.ds(u0, tile8 + n_piece), :]              # (tile8+P, 8*C)
    xe = jnp.concatenate([x_win[a:a + tile8, :] for a in range(n_piece)],
                         axis=1)                                 # (tile8, 8*C*P)

    o_ref[0, :, :] = jnp.dot(
        xe, w_ref[...], preferred_element_type=jnp.float32).astype(o_ref.dtype)


# ----------------------------------------------------------------------------
# LocationLayer forward
# ----------------------------------------------------------------------------
def location_layer_forward(attention_weights_cat, w2, *, kernel_size,
                           tile_t=2048, out_dtype=jnp.float32,
                           use_bf16_inputs=False):
    """attention_weights_cat: (B, C=2, T); w2 from fold_location_weights.
    Returns (B, T, attention_dim)."""
    b, c, t = attention_weights_cat.shape
    k = kernel_size
    assert k % 2 == 1, "same-length conv requires odd kernel_size (module default 31)"
    assert tile_t % 64 == 0, "tile_t must be a multiple of 64"
    pad = (k - 1) // 2
    p = _n_pieces(k)
    ckp, pd = w2.shape
    assert ckp == _PHASE * c * p, "w2 does not match (C, kernel_size)"
    d = pd // _PHASE

    # Effective row tile (in output timesteps) and grid extent.
    eff_tile = min(tile_t, _round_up(t, _PHASE))
    n_tiles = 1 if eff_tile < tile_t else pl.cdiv(t, eff_tile)
    tile8 = eff_tile // _PHASE
    r = n_tiles * tile8 + p                      # input 8-row chunks incl. right halo
    rows = r * _PHASE
    assert rows - pad - t >= 0

    # Layout plumbing on the *raw* 8-B/row input only (left conv halo + tail zeros),
    # then a free row-major reshape to 8-timestep chunks.  No im2col in HBM.
    x_t = jnp.transpose(attention_weights_cat, (0, 2, 1))            # (B, T, C)
    x_t = jnp.pad(x_t, ((0, 0), (pad, rows - pad - t), (0, 0)))      # (B, rows, C)
    x_r = x_t.reshape(b, r, _PHASE * c)                              # (B, R, 8*C)

    if use_bf16_inputs:      # optional (v6e/v7x): halves input/weight streams, f32 accum
        x_r = x_r.astype(jnp.bfloat16)
        w2 = w2.astype(jnp.bfloat16)

    out = pl.pallas_call(
        _location_layer_kernel,
        out_shape=jax.ShapeDtypeStruct((b, n_tiles * tile8, pd), out_dtype),
        grid=(b, n_tiles),
        in_specs=[
            pl.BlockSpec((1, r, _PHASE * c), lambda bi, ti: (bi, 0, 0)),  # raw input
            pl.BlockSpec((ckp, pd), lambda bi, ti: (0, 0)),               # folded weight
        ],
        out_specs=pl.BlockSpec((1, tile8, pd), lambda bi, ti: (bi, ti, 0)),
        compiler_params=pltpu.CompilerParams(
            dimension_semantics=("parallel", "parallel")),
    )(x_r, w2)

    # (B, T/8, 8*D) row-major == (B, T, D) row-major -> reshape is free.
    out = out.reshape(b, n_tiles * eff_tile, d)
    return out[:, :t, :] if n_tiles * eff_tile != t else out


# ----------------------------------------------------------------------------
# Parameter setup: torch layouts + folded kernel-ready weight (built once)
# ----------------------------------------------------------------------------
def init_params(key, *, in_channels=2, n_filters=32, kernel_size=31, attention_dim=128):
    k1, k2 = jax.random.split(key)
    w_conv = 0.1 * jax.random.normal(k1, (n_filters, in_channels, kernel_size), jnp.float32)
    w_dense = 0.1 * jax.random.normal(k2, (attention_dim, n_filters), jnp.float32)
    w2 = fold_location_weights(w_conv, w_dense)
    return w_conv, w_dense, w2


def _reference(x, w_conv, w_dense, kernel_size):
    pad = (kernel_size - 1) // 2
    ref_conv = jax.lax.conv_general_dilated(
        x, w_conv, window_strides=(1,), padding=((pad, pad),),
        dimension_numbers=("NCH", "OIH", "NCH"))
    return jnp.einsum("bft,df->btd", ref_conv, w_dense)


# ----------------------------------------------------------------------------
if __name__ == "__main__":
    # Shapes consistent with the module: batch=2, channels=2 (attn + cum-attn),
    # T=16, attention_n_filters=32, attention_kernel_size=31, attention_dim=128.
    B, C, T = 2, 2, 16
    N_FILTERS, K, ATT_DIM = 32, 31, 128

    root = jax.random.PRNGKey(0)
    k_inp, k_par = jax.random.split(root)
    x = jax.random.normal(k_inp, (B, C, T), dtype=jnp.float32)
    w_conv, w_dense, w2 = init_params(
        k_par, in_channels=C, n_filters=N_FILTERS, kernel_size=K, attention_dim=ATT_DIM)

    fwd = jax.jit(functools.partial(location_layer_forward, kernel_size=K))
    out = fwd(x, w2)
    jax.block_until_ready(out)
    assert out.shape == (B, T, ATT_DIM)

    ref = _reference(x, w_conv, w_dense, K)
    err = float(jnp.max(jnp.abs(out - ref)))
    assert jnp.allclose(out, ref, rtol=1e-4, atol=1e-4), err

    # Second check: exercise the multi-tile path (several T-tiles, dynamic tile
    # offsets, tail slicing) with a small forced tile.
    T2 = 200
    x2 = jax.random.normal(jax.random.PRNGKey(1), (B, C, T2), dtype=jnp.float32)
    fwd_tiled = jax.jit(functools.partial(location_layer_forward, kernel_size=K, tile_t=64))
    out2 = fwd_tiled(x2, w2)
    jax.block_until_ready(out2)
    assert out2.shape == (B, T2, ATT_DIM)
    ref2 = _reference(x2, w_conv, w_dense, K)
    err2 = float(jnp.max(jnp.abs(out2 - ref2)))
    assert jnp.allclose(out2, ref2, rtol=1e-4, atol=1e-4), err2

    print("KERNEL_OK")
</pallas_src>

<mosaic_0001>
module attributes {stable_mosaic.version = 11 : i64} {
  func.func @_location_layer_kernel(%arg0: i32, %arg1: i32, %arg2: memref<1x7x16xf32, #tpu.memory_space<vmem>>, %arg3: memref<80x1024xf32, #tpu.memory_space<vmem>>, %arg4: memref<1x2x1024xf32, #tpu.memory_space<vmem>>) attributes {dimension_semantics = [#tpu.dimension_semantics<parallel>, #tpu.dimension_semantics<parallel>], iteration_bounds = array<i64: 2, 1>, scalar_prefetch = 0 : i64, scratch_operands = 0 : i64, tpu.core_type = #tpu.core_type<tc>, window_params = [{transform_indices = @transform_0, window_bounds = array<i64: 1, 7, 16>}, {pipeline_mode = #tpu.pipeline_mode<synchronous>, transform_indices = @transform_1, window_bounds = array<i64: 80, 1024>}, {transform_indices = @transform_2, window_bounds = array<i64: 1, 2, 1024>}]} {
    %c2_i32 = arith.constant 2 : i32
    %0 = arith.muli %arg1, %c2_i32 : i32
    %c0 = arith.constant 0 : index
    %1 = arith.index_cast %0 : i32 to index
    %c0_0 = arith.constant 0 : index
    %2 = vector.load %arg2[%c0, %1, %c0_0] : memref<1x7x16xf32, #tpu.memory_space<vmem>>, vector<1x7x16xf32>
    %3 = vector.shape_cast %2 : vector<1x7x16xf32> to vector<7x16xf32>
    %4 = vector.extract_strided_slice %3 {offsets = [0, 0], sizes = [2, 16], strides = [1, 1]} : vector<7x16xf32> to vector<2x16xf32>
    %5 = vector.extract_strided_slice %3 {offsets = [1, 0], sizes = [2, 16], strides = [1, 1]} : vector<7x16xf32> to vector<2x16xf32>
    %6 = vector.extract_strided_slice %3 {offsets = [2, 0], sizes = [2, 16], strides = [1, 1]} : vector<7x16xf32> to vector<2x16xf32>
    %7 = vector.extract_strided_slice %3 {offsets = [3, 0], sizes = [2, 16], strides = [1, 1]} : vector<7x16xf32> to vector<2x16xf32>
    %8 = vector.extract_strided_slice %3 {offsets = [4, 0], sizes = [2, 16], strides = [1, 1]} : vector<7x16xf32> to vector<2x16xf32>
    %9 = tpu.concatenate %4, %5, %6, %7, %8 in 1 : vector<2x16xf32>, vector<2x16xf32>, vector<2x16xf32>, vector<2x16xf32>, vector<2x16xf32> -> vector<2x80xf32>
    %c0_1 = arith.constant 0 : index
    %c0_2 = arith.constant 0 : index
    %10 = vector.load %arg3[%c0_1, %c0_2] : memref<80x1024xf32, #tpu.memory_space<vmem>>, vector<80x1024xf32>
    %cst = arith.constant dense<0.000000e+00> : vector<2x1024xf32>
    %11 = tpu.matmul %9, %10, %cst {dimension_numbers = #tpu.dot_dimension_numbers<[1], [0], [0], [1], [0, 0, 1, 1], [], []>} : vector<2x80xf32>, vector<80x1024xf32>, vector<2x1024xf32> -> vector<2x1024xf32>
    %c0_3 = arith.constant 0 : index
    %c0_4 = arith.constant 0 : index
    %c0_5 = arith.constant 0 : index
    %12 = vector.load %arg4[%c0_3, %c0_4, %c0_5] : memref<1x2x1024xf32, #tpu.memory_space<vmem>>, vector<1x2x1024xf32>
    %13 = vector.shape_cast %12 : vector<1x2x1024xf32> to vector<2x1024xf32>
    %14 = vector.shape_cast %11 : vector<2x1024xf32> to vector<1x2x1024xf32>
    tpu.vector_store %arg4[%c0_3, %c0_4, %c0_5], %14 {strides = array<i32>} : memref<1x2x1024xf32, #tpu.memory_space<vmem>>, vector<1x2x1024xf32>,
    return
  }
  func.func @transform_0(%arg0: i32, %arg1: i32) -> (i32, i32, i32) {
    %c0_i32 = arith.constant 0 : i32
    %c0_i32_0 = arith.constant 0 : i32
    %c0_i32_1 = arith.constant 0 : i32
    return %arg0, %c0_i32, %c0_i32_0 : i32, i32, i32
  }
  func.func @transform_1(%arg0: i32, %arg1: i32) -> (i32, i32) {
    %c0_i32 = arith.constant 0 : i32
    %c0_i32_0 = arith.constant 0 : i32
    %c0_i32_1 = arith.constant 0 : i32
    return %c0_i32, %c0_i32_0 : i32, i32
  }
  func.func @transform_2(%arg0: i32, %arg1: i32) -> (i32, i32, i32) {
    %c0_i32 = arith.constant 0 : i32
    %c0_i32_0 = arith.constant 0 : i32
    return %arg0, %arg1, %c0_i32 : i32, i32, i32
  }
}

</mosaic_0001>

<llo_original>
// kernel: location_layer_forward.1
$region0: #{location_layer_forward.1}
  #allocation0 [shape = 'u32[]', space=smem, size = 0x4, offset = 0x4, fixed_abs, tag = 'smem constant byte address 0x4 - core index']
  #allocation1 [shape = 'u32[72,128]{1,0:T(1,128)}', space=vmem, size = 0x9000, scoped, tag = 'internal scratch']
  %s0 = inlined_call_operand.vmem [shape: f32[2,7,16], index: 0, kind: input, shape index: {}]
  %s1 = inlined_call_operand.hbm [shape: f32[80,1024], index: 1, kind: input, shape index: {}]
  %s2 = inlined_call_operand.vmem [shape: f32[2,2,1024], index: 2, kind: output, shape index: {}]
  %s3 = sld [smem:[#allocation0]]
  $region45: #{location_layer_forward.1} parent=0
    _
  %s5 = ssub.s32 1, %s3
  %s6 = scalar_select 0, %s5, %s3
  $region1: #{location_layer_forward.1} parent=0
    #allocation2 [shape = 'u8[327680]{0}', space=vmem, size = 0x50000, scoped, tag = 'input window, operand 1, single buffered']
    #allocation3 [shape = 's32[2]{0}', space=sflag, size = 0x8, scoped, tag = 'scoped memory for location_layer_forward.1']
    %7 = vsyncpa [#allocation3], 0
    loop: start=0, step=1, limit=4
    $region2: #{location_layer_forward.1} parent=1 // loop_pre_header
      _
    $region3: #{location_layer_forward.1} parent=1 // loop_header
      %s9 = sphi 0, %s13
      %p10 = scmp.ge.s32.totalorder %s9, 4
      %s16 = sphi 0, %s28
      %s17 = sphi 0, %s24
      %s18 = sphi 0, %s16
      %s19 = sphi 0, %s17
      %s20 = sphi 0, %s18
      %s21 = sphi 0, %s19
      %s31 = sphi 0, %s33
      %s34 = sphi 0, %s31
      %s35 = sphi 0, %s34
      %s51 = sphi 0, %s35
      %s55 = sphi 0, %s55
      %s57 = sphi 0, %s55
      %s58 = sphi 0, %s57
      %s72 = sphi 0, %s58
      %s80 = sphi 0, %s82
      %s83 = sphi 0, %s80
      %s84 = sphi 0, %s83
      %s100 = sphi 0, %s84
    $region4: #{location_layer_forward.1} parent=1 // loop_header_branch
      %12 = sbr.rel (%p10) target = $region8
    $region5: #{location_layer_forward.1} parent=1 // loop_body
      %s14 = ssub.s32 %s9, 1
      %s15 = ssub.s32 %s9, 2
      %s22 = sadd.s32 1, %s17
      %p23 = scmp.ge.s32.totalorder %s22, 1
      %s24 = scalar_select %p23, 0, %s22
      %s25 = sadd.s32 1, %s16
      %s26 = scalar_select %p23, %s25, %s16
      %p27 = scmp.ge.s32.totalorder %s26, 2
      %s28 = scalar_select %p27, 0, %s26
      %s29 = ssub.s32 %s16, %s28
      %p30 = scmp.eq.s32.totalorder %s29, 0
      %s32 = sadd.s32 %s31, 1
      %s33 = scalar_select %p30, %s31, %s32
      %p36 = pneg %p30
      %p37 = scmp.eq.s32.totalorder %s9, 1
      %p38 = por %p36, %p37
      %p39 = scmp.ne.s32.totalorder %s31, %s34
      %p40 = scmp.eq.s32.totalorder %s9, 0
      %p41 = por %p39, %p40
      %p42 = scmp.ne.s32.totalorder %s31, %s34
      %p43 = scmp.eq.s32.totalorder %s14, 1
      %p44 = por %p42, %p43
      %p45 = scmp.ne.s32.totalorder %s34, %s35
      %p46 = scmp.eq.s32.totalorder %s14, 0
      %p47 = por %p45, %p46
      %p48 = scmp.ne.s32.totalorder %s34, %s35
      %p49 = scmp.eq.s32.totalorder %s15, 1
      %p50 = por %p48, %p49
      %p52 = scmp.ne.s32.totalorder %s35, %s51
      %p53 = scmp.eq.s32.totalorder %s15, 0
      %p54 = por %p52, %p53
      %s56 = sadd.s32 %s55, 1
      %p59 = scmp.eq.s32.totalorder %s9, 1
      %p60 = scmp.ne.s32.totalorder %s55, %s57
      %p61 = scmp.eq.s32.totalorder %s9, 0
      %p62 = por %p60, %p61
      %p63 = scmp.ne.s32.totalorder %s55, %s57
      %p64 = scmp.eq.s32.totalorder %s14, 1
      %p65 = por %p63, %p64
      %p66 = scmp.ne.s32.totalorder %s57, %s58
      %p67 = scmp.eq.s32.totalorder %s14, 0
      %p68 = por %p66, %p67
      %p69 = scmp.ne.s32.totalorder %s57, %s58
      %p70 = scmp.eq.s32.totalorder %s15, 1
      %p71 = por %p69, %p70
      %p73 = scmp.ne.s32.totalorder %s58, %s72
      %p74 = scmp.eq.s32.totalorder %s15, 0
      %p75 = por %p73, %p74
      %s76 = ssub.s32 %s16, %s28
      %s77 = ssub.s32 %s17, %s24
      %s78 = sor.u32 %s76, %s77
      %p79 = scmp.eq.s32.totalorder %s78, 0
      %s81 = sadd.s32 %s80, 1
      %s82 = scalar_select %p79, %s80, %s81
      %p85 = pneg %p79
      %p86 = scmp.eq.s32.totalorder %s9, 1
      %p87 = por %p85, %p86
      %p88 = scmp.ne.s32.totalorder %s80, %s83
      %p89 = scmp.eq.s32.totalorder %s9, 0
      %p90 = por %p88, %p89
      %p91 = scmp.ne.s32.totalorder %s80, %s83
      %p92 = scmp.eq.s32.totalorder %s14, 1
      %p93 = por %p91, %p92
      %p94 = scmp.ne.s32.totalorder %s83, %s84
      %p95 = scmp.eq.s32.totalorder %s14, 0
      %p96 = por %p94, %p95
      %p97 = scmp.ne.s32.totalorder %s83, %s84
      %p98 = scmp.eq.s32.totalorder %s15, 1
      %p99 = por %p97, %p98
      %p101 = scmp.ne.s32.totalorder %s84, %s100
      %p102 = scmp.eq.s32.totalorder %s15, 0
      %p103 = por %p101, %p102
      %p104 = scmp.le.s32.totalorder 1, %s9
      %p105 = scmp.lt.s32.totalorder %s9, 3
      %p106 = pnand %p104, %p105
      %p107 = pneg %p106
      // Predicated region
      $region9: #{location_layer_forward.1} parent=5 // pred_check
        _
      $region10: #{location_layer_forward.1} parent=5 // pred_check_branch
        %109 = sbr.rel (%p106) target = $region12
      $region11: #{location_layer_forward.1} parent=5 // pred_region
        %s110 = ssub.s32 %s9, 1
        // Predicated region
        $region13: #{location_layer_forward.1} parent=11 // pred_check
          %p111 = pneg %p68
        $region14: #{location_layer_forward.1} parent=11 // pred_check_branch
          %113 = sbr.rel (%p111) target = $region16
        $region15: #{location_layer_forward.1} parent=11 // pred_region
          %115 = vsyncadd [#allocation3], 0
          %s116 = sshll.u32 %s1, 4
          %s117 = int_to_ptr.hbm [resolvable:$true] %s116
          %s118 = sshll.u32 [#allocation2], 4
          %s119 = int_to_ptr.vmem [resolvable:$true] %s118
          %124 = dma.hbm_to_vmem [thread:$0]  %s117, 10240, %s119, [#allocation3], 1024, 1024, 64
        $region16: #{location_layer_forward.1} parent=11 // pred_fallthru
          _
      $region12: #{location_layer_forward.1} parent=5 // pred_fallthru
        _
      %p125 = scmp.lt.s32.totalorder %s9, 2
      // Predicated region
      $region17: #{location_layer_forward.1} parent=5 // pred_check
        %p126 = pneg %p125
      $region18: #{location_layer_forward.1} parent=5 // pred_check_branch
        %128 = sbr.rel (%p126) target = $region20
      $region19: #{location_layer_forward.1} parent=5 // pred_region
        // Predicated region
        $region21: #{location_layer_forward.1} parent=19 // pred_check
          %p129 = pneg %p41
        $region22: #{location_layer_forward.1} parent=19 // pred_check_branch
          %131 = sbr.rel (%p129) target = $region24
        $region23: #{location_layer_forward.1} parent=19 // pred_region
          %p132 = scmp.lt.s32.totalorder %s16, 1
          %s133 = scalar_select %p132, %s16, 1
          %s134 = smul.addr %s133, 8
          %s135 = scalar_lea.vmem %s0, %s134
        $region24: #{location_layer_forward.1} parent=19 // pred_fallthru
          _
      $region20: #{location_layer_forward.1} parent=5 // pred_fallthru
        _
      %p136 = scmp.le.s32.totalorder 1, %s9
      %p137 = scmp.lt.s32.totalorder %s9, 3
      %p138 = pnand %p136, %p137
      %p139 = pneg %p138
      // Predicated region
      $region25: #{location_layer_forward.1} parent=5 // pred_check
        _
      $region26: #{location_layer_forward.1} parent=5 // pred_check_branch
        %141 = sbr.rel (%p138) target = $region28
      $region27: #{location_layer_forward.1} parent=5 // pred_region
        %s142 = ssub.s32 %s9, 1
        // Predicated region
        $region29: #{location_layer_forward.1} parent=27 // pred_check
          %p143 = pneg %p68
        $region30: #{location_layer_forward.1} parent=27 // pred_check_branch
          %145 = sbr.rel (%p143) target = $region32
        $region31: #{location_layer_forward.1} parent=27 // pred_region
          %147 = dma.done [#allocation3], 10240
        $region32: #{location_layer_forward.1} parent=27 // pred_fallthru
          _
        %p148 = scmp.lt.s32.totalorder %s18, 1
        %s149 = scalar_select %p148, %s18, 1
        %s150 = smul.addr %s149, 8
        %s151 = scalar_lea.vmem %s0, %s150
        %p152 = pneg %p47
        %p153 = pneg %p44
        %p154 = pneg %p68
        %p155 = pneg %p65
        %p156 = pneg %p96
        %p157 = pneg %p93
        %p158 = scmp.lt.s32.totalorder %s18, 1
        %s159 = scalar_select %p158, %s18, 1
        %p160 = scmp.lt.s32.totalorder %s19, 0
        %s161 = scalar_select %p160, %s19, 0
        %s162 = smul.addr %s161, 8
        %s163 = smul.addr %s159, 8
        %s164 = sadd.s32 %s162, %s163
        %s165 = smul.addr %s164, 2
        %s166 = scalar_lea.vmem %s2, %s165
        %p167 = scmp.lt.s32.totalorder %s18, 1
        %s168 = scalar_select %p167, %s18, 1
        %s169 = smul.addr %s168, 8
        %s170 = scalar_lea.vmem %s0, %s169
        %p171 = scmp.lt.s32.totalorder %s18, 1
        %s172 = scalar_select %p171, %s18, 1
        %p173 = scmp.lt.s32.totalorder %s19, 0
        %s174 = scalar_select %p173, %s19, 0
        %s175 = smul.addr %s174, 8
        %s176 = smul.addr %s172, 8
        %s177 = sadd.s32 %s175, %s176
        %s178 = smul.addr %s177, 2
        %s179 = scalar_lea.vmem %s2, %s178
        %s180 = smul.u32 %s19, 2
        %s181 = scalar_lea.vmem %s170, %s180
        %v182 = vld [vmem:[%s181] sm:$0x7f]
        %v184 = vrot.slane %v182, 1
        %185 = vrot.lane.b32.xlu0 %v184, 16
        %v186 = vpop.permute.xlu0 %185
        %v188 = vrot.slane %v182, 2
        %189 = vrot.lane.b32.xlu0 %v188, 32
        %v190 = vpop.permute.xlu0 %189
        %v192 = vrot.slane %v182, 3
        %193 = vrot.lane.b32.xlu0 %v192, 48
        %v194 = vpop.permute.xlu0 %193
        %v196 = vrot.slane %v182, 4
        %197 = vrot.lane.b32.xlu0 %v196, 64
        %v198 = vpop.permute.xlu0 %197
        %vm200 = vcmask 130048
        %v201 = vsel %vm200, %v182, %v186
        %vm202 = vcmask 261120
        %v203 = vsel %vm202, %v201, %v190
        %vm204 = vcmask 392192
        %v205 = vsel %vm204, %v203, %v194
        %vm206 = vcmask 523264
        %v207 = vsel %vm206, %v205, %v198
        %v208 = vld [vmem:[#allocation2] sm:$0xff]
        %v209 = vld [vmem:[#allocation2 + $0x8] sm:$0xff]
        %v210 = vld [vmem:[#allocation2 + $0x10] sm:$0xff]
        %v211 = vld [vmem:[#allocation2 + $0x18] sm:$0xff]
        %v212 = vld [vmem:[#allocation2 + $0x20] sm:$0xff]
        %v213 = vld [vmem:[#allocation2 + $0x28] sm:$0xff]
        %v214 = vld [vmem:[#allocation2 + $0x30] sm:$0xff]
        %v215 = vld [vmem:[#allocation2 + $0x38] sm:$0xff]
        %v216 = vld [vmem:[#allocation2 + $0x40] sm:$0xff]
        %v217 = vld [vmem:[#allocation2 + $0x48] sm:$0xff]
        %v218 = vld [vmem:[#allocation2 + $0x50] sm:$0xff]
        %v219 = vld [vmem:[#allocation2 + $0x58] sm:$0xff]
        %v220 = vld [vmem:[#allocation2 + $0x60] sm:$0xff]
        %v221 = vld [vmem:[#allocation2 + $0x68] sm:$0xff]
        %v222 = vld [vmem:[#allocation2 + $0x70] sm:$0xff]
        %v223 = vld [vmem:[#allocation2 + $0x78] sm:$0xff]
        %v224 = vld [vmem:[#allocation2 + $0x80] sm:$0xff]
        %v225 = vld [vmem:[#allocation2 + $0x88] sm:$0xff]
        %v226 = vld [vmem:[#allocation2 + $0x90] sm:$0xff]
        %v227 = vld [vmem:[#allocation2 + $0x98] sm:$0xff]
        %v228 = vld [vmem:[#allocation2 + $0xa0] sm:$0xff]
        %v229 = vld [vmem:[#allocation2 + $0xa8] sm:$0xff]
        %v230 = vld [vmem:[#allocation2 + $0xb0] sm:$0xff]
        %v231 = vld [vmem:[#allocation2 + $0xb8] sm:$0xff]
        %v232 = vld [vmem:[#allocation2 + $0xc0] sm:$0xff]
        %v233 = vld [vmem:[#allocation2 + $0xc8] sm:$0xff]
        %v234 = vld [vmem:[#allocation2 + $0xd0] sm:$0xff]
        %v235 = vld [vmem:[#allocation2 + $0xd8] sm:$0xff]
        %v236 = vld [vmem:[#allocation2 + $0xe0] sm:$0xff]
        %v237 = vld [vmem:[#allocation2 + $0xe8] sm:$0xff]
        %v238 = vld [vmem:[#allocation2 + $0xf0] sm:$0xff]
        %v239 = vld [vmem:[#allocation2 + $0xf8] sm:$0xff]
        %v240 = vld [vmem:[#allocation2 + $0x100] sm:$0xff]
        %v241 = vld [vmem:[#allocation2 + $0x108] sm:$0xff]
        %v242 = vld [vmem:[#allocation2 + $0x110] sm:$0xff]
        %v243 = vld [vmem:[#allocation2 + $0x118] sm:$0xff]
        %v244 = vld [vmem:[#allocation2 + $0x120] sm:$0xff]
        %v245 = vld [vmem:[#allocation2 + $0x128] sm:$0xff]
        %v246 = vld [vmem:[#allocation2 + $0x130] sm:$0xff]
        %v247 = vld [vmem:[#allocation2 + $0x138] sm:$0xff]
        %v248 = vld [vmem:[#allocation2 + $0x140] sm:$0xff]
        %v249 = vld [vmem:[#allocation2 + $0x148] sm:$0xff]
        %v250 = vld [vmem:[#allocation2 + $0x150] sm:$0xff]
        %v251 = vld [vmem:[#allocation2 + $0x158] sm:$0xff]
        %v252 = vld [vmem:[#allocation2 + $0x160] sm:$0xff]
        %v253 = vld [vmem:[#allocation2 + $0x168] sm:$0xff]
        %v254 = vld [vmem:[#allocation2 + $0x170] sm:$0xff]
        %v255 = vld [vmem:[#allocation2 + $0x178] sm:$0xff]
        %v256 = vld [vmem:[#allocation2 + $0x180] sm:$0xff]
        %v257 = vld [vmem:[#allocation2 + $0x188] sm:$0xff]
        %v258 = vld [vmem:[#allocation2 + $0x190] sm:$0xff]
        %v259 = vld [vmem:[#allocation2 + $0x198] sm:$0xff]
        %v260 = vld [vmem:[#allocation2 + $0x1a0] sm:$0xff]
        %v261 = vld [vmem:[#allocation2 + $0x1a8] sm:$0xff]
        %v262 = vld [vmem:[#allocation2 + $0x1b0] sm:$0xff]
        %v263 = vld [vmem:[#allocation2 + $0x1b8] sm:$0xff]
        %v264 = vld [vmem:[#allocation2 + $0x1c0] sm:$0xff]
        %v265 = vld [vmem:[#allocation2 + $0x1c8] sm:$0xff]
        %v266 = vld [vmem:[#allocation2 + $0x1d0] sm:$0xff]
        %v267 = vld [vmem:[#allocation2 + $0x1d8] sm:$0xff]
        %v268 = vld [vmem:[#allocation2 + $0x1e0] sm:$0xff]
        %v269 = vld [vmem:[#allocation2 + $0x1e8] sm:$0xff]
        %v270 = vld [vmem:[#allocation2 + $0x1f0] sm:$0xff]
        %v271 = vld [vmem:[#allocation2 + $0x1f8] sm:$0xff]
        %v272 = vld [vmem:[#allocation2 + $0x200] sm:$0xff]
        %v273 = vld [vmem:[#allocation2 + $0x208] sm:$0xff]
        %v274 = vld [vmem:[#allocation2 + $0x210] sm:$0xff]
        %v275 = vld [vmem:[#allocation2 + $0x218] sm:$0xff]
        %v276 = vld [vmem:[#allocation2 + $0x220] sm:$0xff]
        %v277 = vld [vmem:[#allocation2 + $0x228] sm:$0xff]
        %v278 = vld [vmem:[#allocation2 + $0x230] sm:$0xff]
        %v279 = vld [vmem:[#allocation2 + $0x238] sm:$0xff]
        %v280 = vld [vmem:[#allocation2 + $0x240] sm:$0xff]
        %v281 = vld [vmem:[#allocation2 + $0x248] sm:$0xff]
        %v282 = vld [vmem:[#allocation2 + $0x250] sm:$0xff]
        %v283 = vld [vmem:[#allocation2 + $0x258] sm:$0xff]
        %v284 = vld [vmem:[#allocation2 + $0x260] sm:$0xff]
        %v285 = vld [vmem:[#allocation2 + $0x268] sm:$0xff]
        %v286 = vld [vmem:[#allocation2 + $0x270] sm:$0xff]
        %v287 = vld [vmem:[#allocation2 + $0x278] sm:$0xff]
        %vm288 = vcmask 654336
        %v290 = vsel %vm288, %v207, 0
        %292 = vmatpush.msra.mxu0 0.0
        %293 = vmatpush.msra.mxu0 0.0
        %294 = vmatpush.msra.mxu0 0.0
        %295 = vmatpush.msra.mxu0 0.0
        %296 = vmatpush.msra.mxu0 0.0
        %297 = vmatpush.msra.mxu0 0.0
        %298 = vmatpush.msra.mxu0 %v280
        %299 = vmatpush.msra.mxu0 %v272
        %300 = vmatpush.msra.mxu0 %v264
        %301 = vmatpush.msra.mxu0 %v256
        %302 = vmatpush.msra.mxu0 %v248
        %303 = vmatpush.msra.mxu0 %v240
        %304 = vmatpush.msra.mxu0 %v232
        %305 = vmatpush.msra.mxu0 %v224
        %306 = vmatpush.msra.mxu0 %v216
        %307 = vmatpush.msra.mxu0 %v208
        %308 = vmatmul.f32.gmra.mxu0 %v290
        %v309 = vpop.f32.mrf.mxu0
        %v310 = vadd.f32 0.0, %v309
        %311 = vdwg.mxu0
        %312 = vmatpush.msra.mxu0 0.0
        %313 = vmatpush.msra.mxu0 0.0
        %314 = vmatpush.msra.mxu0 0.0
        %315 = vmatpush.msra.mxu0 0.0
        %316 = vmatpush.msra.mxu0 0.0
        %317 = vmatpush.msra.mxu0 0.0
        %318 = vmatpush.msra.mxu0 %v281
        %319 = vmatpush.msra.mxu0 %v273
        %320 = vmatpush.msra.mxu0 %v265
        %321 = vmatpush.msra.mxu0 %v257
        %322 = vmatpush.msra.mxu0 %v249
        %323 = vmatpush.msra.mxu0 %v241
        %324 = vmatpush.msra.mxu0 %v233
        %325 = vmatpush.msra.mxu0 %v225
        %326 = vmatpush.msra.mxu0 %v217
        %327 = vmatpush.msra.mxu0 %v209
        %328 = vmatmul.f32.gmra.mxu0 %v290
        %v329 = vpop.f32.mrf.mxu0
        %v330 = vadd.f32 0.0, %v329
        %331 = vdwg.mxu0
        %332 = vmatpush.msra.mxu0 0.0
        %333 = vmatpush.msra.mxu0 0.0
        %334 = vmatpush.msra.mxu0 0.0
        %335 = vmatpush.msra.mxu0 0.0
        %336 = vmatpush.msra.mxu0 0.0
        %337 = vmatpush.msra.mxu0 0.0
        %338 = vmatpush.msra.mxu0 %v282
        %339 = vmatpush.msra.mxu0 %v274
        %340 = vmatpush.msra.mxu0 %v266
        %341 = vmatpush.msra.mxu0 %v258
        %342 = vmatpush.msra.mxu0 %v250
        %343 = vmatpush.msra.mxu0 %v242
        %344 = vmatpush.msra.mxu0 %v234
        %345 = vmatpush.msra.mxu0 %v226
        %346 = vmatpush.msra.mxu0 %v218
        %347 = vmatpush.msra.mxu0 %v210
        %348 = vmatmul.f32.gmra.mxu0 %v290
        %v349 = vpop.f32.mrf.mxu0
        %v350 = vadd.f32 0.0, %v349
        %351 = vdwg.mxu0
        %352 = vmatpush.msra.mxu0 0.0
        %353 = vmatpush.msra.mxu0 0.0
        %354 = vmatpush.msra.mxu0 0.0
        %355 = vmatpush.msra.mxu0 0.0
        %356 = vmatpush.msra.mxu0 0.0
        %357 = vmatpush.msra.mxu0 0.0
        %358 = vmatpush.msra.mxu0 %v283
        %359 = vmatpush.msra.mxu0 %v275
        %360 = vmatpush.msra.mxu0 %v267
        %361 = vmatpush.msra.mxu0 %v259
        %362 = vmatpush.msra.mxu0 %v251
        %363 = vmatpush.msra.mxu0 %v243
        %364 = vmatpush.msra.mxu0 %v235
        %365 = vmatpush.msra.mxu0 %v227
        %366 = vmatpush.msra.mxu0 %v219
        %367 = vmatpush.msra.mxu0 %v211
        %368 = vmatmul.f32.gmra.mxu0 %v290
        %v369 = vpop.f32.mrf.mxu0
        %v370 = vadd.f32 0.0, %v369
        %371 = vdwg.mxu0
        %372 = vmatpush.msra.mxu0 0.0
        %373 = vmatpush.msra.mxu0 0.0
        %374 = vmatpush.msra.mxu0 0.0
        %375 = vmatpush.msra.mxu0 0.0
        %376 = vmatpush.msra.mxu0 0.0
        %377 = vmatpush.msra.mxu0 0.0
        %378 = vmatpush.msra.mxu0 %v284
        %379 = vmatpush.msra.mxu0 %v276
        %380 = vmatpush.msra.mxu0 %v268
        %381 = vmatpush.msra.mxu0 %v260
        %382 = vmatpush.msra.mxu0 %v252
        %383 = vmatpush.msra.mxu0 %v244
        %384 = vmatpush.msra.mxu0 %v236
        %385 = vmatpush.msra.mxu0 %v228
        %386 = vmatpush.msra.mxu0 %v220
        %387 = vmatpush.msra.mxu0 %v212
        %388 = vmatmul.f32.gmra.mxu0 %v290
        %v389 = vpop.f32.mrf.mxu0
        %v390 = vadd.f32 0.0, %v389
        %391 = vdwg.mxu0
        %392 = vmatpush.msra.mxu0 0.0
        %393 = vmatpush.msra.mxu0 0.0
        %394 = vmatpush.msra.mxu0 0.0
        %395 = vmatpush.msra.mxu0 0.0
        %396 = vmatpush.msra.mxu0 0.0
        %397 = vmatpush.msra.mxu0 0.0
        %398 = vmatpush.msra.mxu0 %v285
        %399 = vmatpush.msra.mxu0 %v277
        %400 = vmatpush.msra.mxu0 %v269
        %401 = vmatpush.msra.mxu0 %v261
        %402 = vmatpush.msra.mxu0 %v253
        %403 = vmatpush.msra.mxu0 %v245
        %404 = vmatpush.msra.mxu0 %v237
        %405 = vmatpush.msra.mxu0 %v229
        %406 = vmatpush.msra.mxu0 %v221
        %407 = vmatpush.msra.mxu0 %v213
        %408 = vmatmul.f32.gmra.mxu0 %v290
        %v409 = vpop.f32.mrf.mxu0
        %v410 = vadd.f32 0.0, %v409
        %411 = vdwg.mxu0
        %412 = vmatpush.msra.mxu0 0.0
        %413 = vmatpush.msra.mxu0 0.0
        %414 = vmatpush.msra.mxu0 0.0
        %415 = vmatpush.msra.mxu0 0.0
        %416 = vmatpush.msra.mxu0 0.0
        %417 = vmatpush.msra.mxu0 0.0
        %418 = vmatpush.msra.mxu0 %v286
        %419 = vmatpush.msra.mxu0 %v278
        %420 = vmatpush.msra.mxu0 %v270
        %421 = vmatpush.msra.mxu0 %v262
        %422 = vmatpush.msra.mxu0 %v254
        %423 = vmatpush.msra.mxu0 %v246
        %424 = vmatpush.msra.mxu0 %v238
        %425 = vmatpush.msra.mxu0 %v230
        %426 = vmatpush.msra.mxu0 %v222
        %427 = vmatpush.msra.mxu0 %v214
        %428 = vmatmul.f32.gmra.mxu0 %v290
        %v429 = vpop.f32.mrf.mxu0
        %v430 = vadd.f32 0.0, %v429
        %431 = vdwg.mxu0
        %432 = vmatpush.msra.mxu0 0.0
        %433 = vmatpush.msra.mxu0 0.0
        %434 = vmatpush.msra.mxu0 0.0
        %435 = vmatpush.msra.mxu0 0.0
        %436 = vmatpush.msra.mxu0 0.0
        %437 = vmatpush.msra.mxu0 0.0
        %438 = vmatpush.msra.mxu0 %v287
        %439 = vmatpush.msra.mxu0 %v279
        %440 = vmatpush.msra.mxu0 %v271
        %441 = vmatpush.msra.mxu0 %v263
        %442 = vmatpush.msra.mxu0 %v255
        %443 = vmatpush.msra.mxu0 %v247
        %444 = vmatpush.msra.mxu0 %v239
        %445 = vmatpush.msra.mxu0 %v231
        %446 = vmatpush.msra.mxu0 %v223
        %447 = vmatpush.msra.mxu0 %v215
        %448 = vmatmul.f32.gmra.mxu0 %v290
        %v449 = vpop.f32.mrf.mxu0
        %v450 = vadd.f32 0.0, %v449
        %451 = vdwg.mxu0
        %v460 = vrot.slane %v330, 6
        %v461 = vrot.slane %v350, 4
        %v462 = vrot.slane %v370, 2
        %v463 = vrot.slane %v410, 6
        %v464 = vrot.slane %v430, 4
        %v465 = vrot.slane %v450, 2
        %vm466 = vcmask 1041408
        %v467 = vsel %vm466, %v310, %v460
        %vm468 = vcmask 1045508
        %v469 = vsel %vm468, %v461, %v462
        %vm470 = vcmask 1043456
        %v471 = vsel %vm470, %v467, %v469
        %v472 = vsel %vm466, %v390, %v463
        %v473 = vsel %vm468, %v464, %v465
        %v474 = vsel %vm470, %v472, %v473
        %477 = vst [vmem:[%s179] sm:$0xff] %v471
        %478 = vst [vmem:[%s179 + $0x8] sm:$0xff] %v474
        %p479 = scmp.lt.s32.totalorder %s18, 1
        %s480 = scalar_select %p479, %s18, 1
        %p481 = scmp.lt.s32.totalorder %s19, 0
        %s482 = scalar_select %p481, %s19, 0
        %s483 = smul.addr %s482, 8
        %s484 = smul.addr %s480, 8
        %s485 = sadd.s32 %s483, %s484
        %s486 = smul.addr %s485, 2
        %s487 = scalar_lea.vmem %s2, %s486
        // Predicated region
        $region33: #{location_layer_forward.1} parent=27 // pred_check
          %p488 = pneg %p93
        $region34: #{location_layer_forward.1} parent=27 // pred_check_branch
          %490 = sbr.rel (%p488) target = $region36
        $region35: #{location_layer_forward.1} parent=27 // pred_region
          _
        $region36: #{location_layer_forward.1} parent=27 // pred_fallthru
          _
      $region28: #{location_layer_forward.1} parent=5 // pred_fallthru
        _
      %p491 = scmp.le.s32.totalorder 2, %s9
      // Predicated region
      $region37: #{location_layer_forward.1} parent=5 // pred_check
        %p492 = pneg %p491
      $region38: #{location_layer_forward.1} parent=5 // pred_check_branch
        %494 = sbr.rel (%p492) target = $region40
      $region39: #{location_layer_forward.1} parent=5 // pred_region
        %s495 = ssub.s32 %s9, 2
        // Predicated region
        $region41: #{location_layer_forward.1} parent=39 // pred_check
          %p496 = pneg %p99
        $region42: #{location_layer_forward.1} parent=39 // pred_check_branch
          %498 = sbr.rel (%p496) target = $region44
        $region43: #{location_layer_forward.1} parent=39 // pred_region
          %p499 = scmp.lt.s32.totalorder %s20, 1
          %s500 = scalar_select %p499, %s20, 1
          %p501 = scmp.lt.s32.totalorder %s21, 0
          %s502 = scalar_select %p501, %s21, 0
          %s503 = smul.addr %s502, 8
          %s504 = smul.addr %s500, 8
          %s505 = sadd.s32 %s503, %s504
          %s506 = smul.addr %s505, 2
          %s507 = scalar_lea.vmem %s2, %s506
        $region44: #{location_layer_forward.1} parent=39 // pred_fallthru
          _
      $region40: #{location_layer_forward.1} parent=5 // pred_fallthru
        _
    $region6: #{location_layer_forward.1} parent=1 // loop_footer
      %s13 = sadd.s32 1, %s9
    $region7: #{location_layer_forward.1} parent=1 // loop_footer_branch
      %8 = sbr.rel target = $region3
    $region8: #{location_layer_forward.1} parent=1 // loop_exit
      _
    %508 = vsyncpa [#allocation3], 1
    %s509 = scalar_lea.sflag [#allocation3], 1
    %510 = vsyncpa %s509, 1

</llo_original>
